<compile_context>
chip_gen: v7x
topology: tpu7x:2x2x1
jax: 0.10.0
libtpu: 0.0.40
codegen_flags: <defaults>
</compile_context>

<pallas_src>
import functools

import jax
import jax.numpy as jnp
from jax.experimental import pallas as pl
from jax.experimental.pallas import tpu as pltpu


def _round_up(x: int, m: int) -> int:
    return ((x + m - 1) // m) * m


def _cdiv(a: int, b: int) -> int:
    return (a + b - 1) // b


def qnet_kernel(x_ref, w1_ref, b1_ref, w2_ref, b2_ref, o_ref):
    # Cast the state tile to the weight dtype at the MXU boundary only
    # (no-op when dtypes already match; the HBM stream keeps the caller's dtype).
    x = x_ref[...].astype(w1_ref.dtype)
    # fc1: x @ W1 on the MXU with f32 accumulation.
    h = jnp.dot(x, w1_ref[...], preferred_element_type=jnp.float32)
    # Bias add + ReLU in f32 on the VPU (v5e has no bf16 VPU).
    h = jnp.maximum(h + b1_ref[...], 0.0)
    # fc2 (action head): cast h to the weight dtype only at the MXU boundary.
    out = jnp.dot(h.astype(w2_ref.dtype), w2_ref[...],
                  preferred_element_type=jnp.float32)
    o_ref[...] = (out + b2_ref[...]).astype(o_ref.dtype)


def _choose_tile_b(B, input_dim, fc1_pad, n_action, in_itemsize, out_itemsize):
    """Pick the batch tile: MiB-scale state per grid step, VMEM-bounded, and
    (for very large batches) enough grid steps to feed both v7x TensorCores."""
    # Approximate per-row VMEM cost: double-buffered state tile, f32 hidden
    # activation (+ its cast for the 2nd matmul), double-buffered output tile.
    per_row = (2 * input_dim * in_itemsize
               + fc1_pad * 4 + fc1_pad * in_itemsize
               + 2 * n_action * out_itemsize + n_action * 4)
    vmem_budget = 10 << 20                  # headroom under v5e's 16 MiB scoped default
    t_vmem = max(1, vmem_budget // per_row)
    # ~2 MiB of streamed state per step amortizes the ~0.35 us/step overhead.
    t_bw = max(1, (2 << 20) // max(1, input_dim * in_itemsize))
    t = min(t_vmem, t_bw, 16384)
    # Only split for megacore when each core still gets several >=2048-row tiles.
    if B >= 8 * 2048:
        t = min(t, _cdiv(B, 8))
    # 16-row alignment keeps both f32 (8) and bf16 (16) sublane packing dense.
    t = max(16, _round_up(t, 16))
    t = min(t, _round_up(B, 16))
    return t


@functools.partial(jax.jit, static_argnames=("compute_dtype",))
def qnetwork_forward(state, w1, b1, w2, b2, *, compute_dtype=None):
    """Forward pass of Qnetwork.

    state: (B, input_dim)
    w1:    (input_dim, fc1_dim)   b1: (1, fc1_dim)
    w2:    (fc1_dim, n_action)    b2: (1, n_action)
    returns (B, n_action) in state's dtype.

    compute_dtype: if set (e.g. jnp.bfloat16), only the *weights* are cast
    (tiny arrays). The state stream is never cast here -- that would add an
    extra full HBM pass; store/pass state in bf16 upstream for real savings.
    """
    B, input_dim = state.shape
    fc1_dim = w1.shape[1]
    n_action = w2.shape[1]
    out_dtype = state.dtype

    # --- Pad fc1 to a multiple of 128 lanes (tiny weight arrays only). -------
    # Mathematically neutral: padded W1 columns are zero -> ReLU(0)=0 -> the
    # corresponding (zero) W2 rows contribute nothing.
    fc1_pad = _round_up(max(fc1_dim, 128), 128)
    if fc1_pad != fc1_dim:
        pad = fc1_pad - fc1_dim
        w1 = jnp.pad(w1, ((0, 0), (0, pad)))
        b1 = jnp.pad(b1, ((0, 0), (0, pad)))
        w2 = jnp.pad(w2, ((0, pad), (0, 0)))

    # --- Optional low-precision MXU path: cast weights only. -----------------
    if compute_dtype is not None:
        w1 = w1.astype(compute_dtype)
        w2 = w2.astype(compute_dtype)
    b1 = b1.astype(jnp.float32)
    b2 = b2.astype(jnp.float32)

    in_itemsize = jnp.dtype(state.dtype).itemsize
    out_itemsize = jnp.dtype(out_dtype).itemsize
    w_itemsize = jnp.dtype(w1.dtype).itemsize

    tile_b = _choose_tile_b(B, input_dim, fc1_pad, n_action,
                            in_itemsize, out_itemsize)
    # Ragged last block: out-of-bounds reads are padded, writes are masked,
    # so no jnp.pad copy of the state is needed.
    grid = (_cdiv(B, tile_b),)

    cost = pl.CostEstimate(
        flops=2 * B * (input_dim * fc1_pad + fc1_pad * n_action),
        transcendentals=0,
        bytes_accessed=(
            B * input_dim * in_itemsize                          # state stream
            + (input_dim * fc1_pad + fc1_pad * n_action) * w_itemsize  # weights (once)
            + (fc1_pad + n_action) * 4                           # biases (f32)
            + B * n_action * out_itemsize                        # output
        ),
    )

    out = pl.pallas_call(
        qnet_kernel,
        out_shape=jax.ShapeDtypeStruct((B, n_action), out_dtype),
        grid=grid,
        in_specs=[
            # State: one (tile_b, input_dim) tile per grid step (pipelined).
            # TODO(synk): if profiling shows exposed DMA at huge tiles, sweep
            # pipeline_mode=pl.Buffered(3) on this spec only.
            pl.BlockSpec((tile_b, input_dim), lambda i: (i, 0)),
            # Weights / biases: same block every step -> DMA'd once, resident.
            pl.BlockSpec((input_dim, fc1_pad), lambda i: (0, 0)),
            pl.BlockSpec((1, fc1_pad), lambda i: (0, 0)),
            pl.BlockSpec((fc1_pad, n_action), lambda i: (0, 0)),
            pl.BlockSpec((1, n_action), lambda i: (0, 0)),
        ],
        out_specs=pl.BlockSpec((tile_b, n_action), lambda i: (i, 0)),
        compiler_params=pltpu.CompilerParams(
            # Batch tiles are independent -> shard across v7x's 2 TensorCores.
            dimension_semantics=("parallel",),
        ),
        cost_estimate=cost,
    )(state, w1, b1, w2, b2)

    return out


def init_params(key, input_dim, fc1_dim, n_action, dtype=jnp.float32):
    """Deterministic synthetic init mimicking PyTorch Linear's U(-1/sqrt(fan_in), .)."""
    k1, k2, k3, k4 = jax.random.split(key, 4)
    bound1 = 1.0 / jnp.sqrt(input_dim)
    bound2 = 1.0 / jnp.sqrt(fc1_dim)
    # Stored already transposed: (in_features, out_features)
    w1 = jax.random.uniform(k1, (input_dim, fc1_dim), dtype, -bound1, bound1)
    b1 = jax.random.uniform(k2, (1, fc1_dim), dtype, -bound1, bound1)
    w2 = jax.random.uniform(k3, (fc1_dim, n_action), dtype, -bound2, bound2)
    b2 = jax.random.uniform(k4, (1, n_action), dtype, -bound2, bound2)
    return w1, b1, w2, b2


if __name__ == "__main__":
    # Small shapes consistent with Qnetwork(input_dim, fc1_dim, fc2_dim, n_action, lr);
    # fc2_dim is unused by the module's nn.Sequential.
    batch, input_dim, fc1_dim, n_action = 8, 32, 64, 4

    key = jax.random.PRNGKey(0)
    k_state, k_params, k_state_r = jax.random.split(key, 3)
    state = jax.random.normal(k_state, (batch, input_dim), jnp.float32)
    w1, b1, w2, b2 = init_params(k_params, input_dim, fc1_dim, n_action)

    # Pure-JAX reference of the same forward.
    ref = jnp.maximum(state @ w1 + b1, 0.0) @ w2 + b2

    # f32 path (tight tolerance).
    out_f32 = jax.block_until_ready(qnetwork_forward(state, w1, b1, w2, b2))
    assert out_f32.shape == (batch, n_action)
    assert jnp.allclose(out_f32, ref, atol=1e-5, rtol=1e-5)

    # Ragged batch (not a multiple of 8 / of the tile) exercises the masked tail.
    batch_r = 37
    state_r = jax.random.normal(k_state_r, (batch_r, input_dim), jnp.float32)
    ref_r = jnp.maximum(state_r @ w1 + b1, 0.0) @ w2 + b2
    out_r = jax.block_until_ready(qnetwork_forward(state_r, w1, b1, w2, b2))
    assert out_r.shape == (batch_r, n_action)
    assert jnp.allclose(out_r, ref_r, atol=1e-5, rtol=1e-5)

    # bf16 storage path: state is stored/passed as bf16 upstream (no wrapper
    # cast); weights cast to bf16; accumulation stays f32 inside the kernel.
    state_bf16 = state.astype(jnp.bfloat16)
    out_bf16 = jax.block_until_ready(
        qnetwork_forward(state_bf16, w1, b1, w2, b2, compute_dtype=jnp.bfloat16))
    assert out_bf16.shape == (batch, n_action)
    assert jnp.allclose(out_bf16.astype(jnp.float32), ref, atol=5e-2, rtol=5e-2)

    print("KERNEL_OK")
</pallas_src>

<mosaic_0001>
module attributes {stable_mosaic.version = 11 : i64} {
  func.func @qnet_kernel(%arg0: i32, %arg1: memref<16x32xf32, #tpu.memory_space<vmem>>, %arg2: memref<32x128xf32, #tpu.memory_space<vmem>>, %arg3: memref<1x128xf32, #tpu.memory_space<vmem>>, %arg4: memref<128x4xf32, #tpu.memory_space<vmem>>, %arg5: memref<1x4xf32, #tpu.memory_space<vmem>>, %arg6: memref<16x4xf32, #tpu.memory_space<vmem>>) attributes {dimension_semantics = [#tpu.dimension_semantics<parallel>], iteration_bounds = array<i64: 1>, scalar_prefetch = 0 : i64, scratch_operands = 0 : i64, tpu.core_type = #tpu.core_type<tc>, window_params = [{transform_indices = @transform_0, window_bounds = array<i64: 16, 32>}, {pipeline_mode = #tpu.pipeline_mode<synchronous>, transform_indices = @transform_1, window_bounds = array<i64: 32, 128>}, {pipeline_mode = #tpu.pipeline_mode<synchronous>, transform_indices = @transform_2, window_bounds = array<i64: 1, 128>}, {pipeline_mode = #tpu.pipeline_mode<synchronous>, transform_indices = @transform_3, window_bounds = array<i64: 128, 4>}, {pipeline_mode = #tpu.pipeline_mode<synchronous>, transform_indices = @transform_4, window_bounds = array<i64: 1, 4>}, {transform_indices = @transform_5, window_bounds = array<i64: 16, 4>}]} {
    %c0 = arith.constant 0 : index
    %c0_0 = arith.constant 0 : index
    %0 = vector.load %arg1[%c0, %c0_0] : memref<16x32xf32, #tpu.memory_space<vmem>>, vector<16x32xf32>
    %c0_1 = arith.constant 0 : index
    %c0_2 = arith.constant 0 : index
    %1 = vector.load %arg2[%c0_1, %c0_2] : memref<32x128xf32, #tpu.memory_space<vmem>>, vector<32x128xf32>
    %cst = arith.constant dense<0.000000e+00> : vector<16x128xf32>
    %2 = tpu.matmul %0, %1, %cst {dimension_numbers = #tpu.dot_dimension_numbers<[1], [0], [0], [1], [0, 0, 1, 1], [], []>} : vector<16x32xf32>, vector<32x128xf32>, vector<16x128xf32> -> vector<16x128xf32>
    %c0_3 = arith.constant 0 : index
    %c0_4 = arith.constant 0 : index
    %3 = vector.load %arg3[%c0_3, %c0_4] : memref<1x128xf32, #tpu.memory_space<vmem>>, vector<1x128xf32>
    %4 = vector.broadcast %3 : vector<1x128xf32> to vector<16x128xf32>
    %5 = arith.addf %2, %4 : vector<16x128xf32>
    %cst_5 = arith.constant 0.000000e+00 : f32
    %6 = vector.broadcast %cst_5 : f32 to vector<16x128xf32>
    %7 = arith.maximumf %5, %6 : vector<16x128xf32>
    %c0_6 = arith.constant 0 : index
    %c0_7 = arith.constant 0 : index
    %8 = vector.load %arg4[%c0_6, %c0_7] : memref<128x4xf32, #tpu.memory_space<vmem>>, vector<128x4xf32>
    %cst_8 = arith.constant dense<0.000000e+00> : vector<16x4xf32>
    %9 = tpu.matmul %7, %8, %cst_8 {dimension_numbers = #tpu.dot_dimension_numbers<[1], [0], [0], [1], [0, 0, 1, 1], [], []>} : vector<16x128xf32>, vector<128x4xf32>, vector<16x4xf32> -> vector<16x4xf32>
    %c0_9 = arith.constant 0 : index
    %c0_10 = arith.constant 0 : index
    %10 = vector.load %arg5[%c0_9, %c0_10] : memref<1x4xf32, #tpu.memory_space<vmem>>, vector<1x4xf32>
    %11 = vector.broadcast %10 : vector<1x4xf32> to vector<16x4xf32>
    %12 = arith.addf %9, %11 : vector<16x4xf32>
    %c0_11 = arith.constant 0 : index
    %c0_12 = arith.constant 0 : index
    %13 = vector.load %arg6[%c0_11, %c0_12] : memref<16x4xf32, #tpu.memory_space<vmem>>, vector<16x4xf32>
    tpu.vector_store %arg6[%c0_11, %c0_12], %12 {strides = array<i32>} : memref<16x4xf32, #tpu.memory_space<vmem>>, vector<16x4xf32>,
    return
  }
  func.func @transform_0(%arg0: i32) -> (i32, i32) {
    %c0_i32 = arith.constant 0 : i32
    %c0_i32_0 = arith.constant 0 : i32
    return %arg0, %c0_i32 : i32, i32
  }
  func.func @transform_1(%arg0: i32) -> (i32, i32) {
    %c0_i32 = arith.constant 0 : i32
    %c0_i32_0 = arith.constant 0 : i32
    %c0_i32_1 = arith.constant 0 : i32
    return %c0_i32, %c0_i32_0 : i32, i32
  }
  func.func @transform_2(%arg0: i32) -> (i32, i32) {
    %c0_i32 = arith.constant 0 : i32
    %c0_i32_0 = arith.constant 0 : i32
    %c0_i32_1 = arith.constant 0 : i32
    return %c0_i32, %c0_i32_0 : i32, i32
  }
  func.func @transform_3(%arg0: i32) -> (i32, i32) {
    %c0_i32 = arith.constant 0 : i32
    %c0_i32_0 = arith.constant 0 : i32
    %c0_i32_1 = arith.constant 0 : i32
    return %c0_i32, %c0_i32_0 : i32, i32
  }
  func.func @transform_4(%arg0: i32) -> (i32, i32) {
    %c0_i32 = arith.constant 0 : i32
    %c0_i32_0 = arith.constant 0 : i32
    %c0_i32_1 = arith.constant 0 : i32
    return %c0_i32, %c0_i32_0 : i32, i32
  }
  func.func @transform_5(%arg0: i32) -> (i32, i32) {
    %c0_i32 = arith.constant 0 : i32
    %c0_i32_0 = arith.constant 0 : i32
    return %arg0, %c0_i32 : i32, i32
  }
}

</mosaic_0001>

<llo_original>
// kernel: qnetwork_forward.1
$region0: #{qnetwork_forward.1}
  #allocation0 [shape = 'u32[]', space=smem, size = 0x4, offset = 0x4, fixed_abs, tag = 'smem constant byte address 0x4 - core index']
  #allocation1 [shape = 'u32[144,128]{1,0:T(1,128)}', space=vmem, size = 0x12000, scoped, tag = 'internal scratch']
  %s0 = inlined_call_operand.vmem [shape: f32[8,32], index: 0, kind: input, shape index: {}]
  %s1 = inlined_call_operand.vmem [shape: f32[32,128], index: 1, kind: input, shape index: {}]
  %s2 = inlined_call_operand.vmem [shape: f32[1,128], index: 2, kind: input, shape index: {}]
  %s3 = inlined_call_operand.vmem [shape: f32[128,4], index: 3, kind: input, shape index: {}]
  %s4 = inlined_call_operand.vmem [shape: f32[1,4], index: 4, kind: input, shape index: {}]
  %s5 = inlined_call_operand.vmem [shape: f32[8,4], index: 5, kind: output, shape index: {}]
  %s6 = sld [smem:[#allocation0]]
  $region64: #{qnetwork_forward.1} parent=0
    _
  %s8 = ssub.s32 1, %s6
  %s9 = scalar_select 0, %s8, %s6
  $region1: #{qnetwork_forward.1} parent=0
    #allocation2 [shape = 'u8[8192]{0}', space=vmem, size = 0x2000, scoped, tag = 'output window, operand 0, single buffered']
    // Predicated region
    $region2: #{qnetwork_forward.1} parent=1 // pred_check
      _
    $region3: #{qnetwork_forward.1} parent=1 // pred_check_branch
      %11 = sbr.rel (0) target = $region5
    $region4: #{qnetwork_forward.1} parent=1 // pred_region
      _
    $region5: #{qnetwork_forward.1} parent=1 // pred_fallthru
      _
    // Predicated region
    $region6: #{qnetwork_forward.1} parent=1 // pred_check
      _
    $region7: #{qnetwork_forward.1} parent=1 // pred_check_branch
      %13 = sbr.rel (0) target = $region9
    $region8: #{qnetwork_forward.1} parent=1 // pred_region
      _
    $region9: #{qnetwork_forward.1} parent=1 // pred_fallthru
      _
    // Predicated region
    $region10: #{qnetwork_forward.1} parent=1 // pred_check
      _
    $region11: #{qnetwork_forward.1} parent=1 // pred_check_branch
      %15 = sbr.rel (0) target = $region13
    $region12: #{qnetwork_forward.1} parent=1 // pred_region
      _
    $region13: #{qnetwork_forward.1} parent=1 // pred_fallthru
      _
    // Predicated region
    $region14: #{qnetwork_forward.1} parent=1 // pred_check
      _
    $region15: #{qnetwork_forward.1} parent=1 // pred_check_branch
      %17 = sbr.rel (0) target = $region17
    $region16: #{qnetwork_forward.1} parent=1 // pred_region
      _
    $region17: #{qnetwork_forward.1} parent=1 // pred_fallthru
      _
    // Predicated region
    $region18: #{qnetwork_forward.1} parent=1 // pred_check
      _
    $region19: #{qnetwork_forward.1} parent=1 // pred_check_branch
      %19 = sbr.rel (0) target = $region21
    $region20: #{qnetwork_forward.1} parent=1 // pred_region
      _
    $region21: #{qnetwork_forward.1} parent=1 // pred_fallthru
      _
    %v20 = vld [vmem:[%s0] sm:$0xff]
    %v21 = vld [vmem:[%s0 + $0x8] sm:$0xff]
    %v22 = vld [vmem:[%s1] sm:$0xff]
    %v23 = vld [vmem:[%s1 + $0x8] sm:$0xff]
    %v24 = vld [vmem:[%s1 + $0x10] sm:$0xff]
    %v25 = vld [vmem:[%s1 + $0x18] sm:$0xff]
    %v26 = vld [vmem:[%s2] sm:$0x1]
    %v28 = vlaneseq
    %v29 = vshrl.u32 %v28, 7
    %v30 = vsub.s32 0, %v29
    %v31 = vrot.slane %v26, %v30
    %vm33 = vcmask 261120
    %v35 = vsel %vm33, %v20, 0
    %v38 = vsel %vm33, %v21, 0
    %40 = vmatprep.subr.mxu0 0.0
    %41 = vmatpush1.msra.mxu0 %v22
    %42 = vmatprep.subr.mxu0 0.0
    %43 = vmatpush1.msra.mxu0 %v23
    %44 = vmatprep.subr.mxu0 0.0
    %45 = vmatpush1.msra.mxu0 %v24
    %46 = vmatprep.subr.mxu0 0.0
    %47 = vmatpush1.msra.mxu0 %v25
    %48 = vmatprep.subr.mxu0 0.0
    %49 = vmatpush1.msra.mxu0 0.0
    %50 = vmatprep.subr.mxu0 0.0
    %51 = vmatpush1.msra.mxu0 0.0
    %52 = vmatprep.subr.mxu0 0.0
    %53 = vmatpush1.msra.mxu0 0.0
    %54 = vmatprep.subr.mxu0 0.0
    %55 = vmatpush1.msra.mxu0 0.0
    %56 = vmatprep.subr.mxu0 0.0
    %57 = vmatpush1.msra.mxu0 0.0
    %58 = vmatprep.subr.mxu0 0.0
    %59 = vmatpush1.msra.mxu0 0.0
    %60 = vmatprep.subr.mxu0 0.0
    %61 = vmatpush1.msra.mxu0 0.0
    %62 = vmatprep.subr.mxu0 0.0
    %63 = vmatpush1.msra.mxu0 0.0
    %64 = vmatprep.subr.mxu0 0.0
    %65 = vmatpush1.msra.mxu0 0.0
    %66 = vmatprep.subr.mxu0 0.0
    %67 = vmatpush1.msra.mxu0 0.0
    %68 = vmatprep.subr.mxu0 0.0
    %69 = vmatpush1.msra.mxu0 0.0
    %70 = vmatprep.subr.mxu0 0.0
    %71 = vmatpush1.msra.mxu0 0.0
    %72 = vmatprep.subr.mxu0 0.0
    %73 = vmatpush1.msra.mxu0 0.0
    %74 = vmatprep.subr.mxu0 0.0
    %75 = vmatpush1.msra.mxu0 0.0
    %76 = vmatprep.subr.mxu0 0.0
    %77 = vmatpush1.msra.mxu0 0.0
    %78 = vmatprep.subr.mxu0 0.0
    %79 = vmatpush1.msra.mxu0 0.0
    %80 = vmatprep.subr.mxu0 0.0
    %81 = vmatpush1.msra.mxu0 0.0
    %82 = vmatprep.subr.mxu0 0.0
    %83 = vmatpush1.msra.mxu0 0.0
    %84 = vmatprep.subr.mxu0 0.0
    %85 = vmatpush1.msra.mxu0 0.0
    %86 = vmatprep.subr.mxu0 0.0
    %87 = vmatpush1.msra.mxu0 0.0
    %88 = vmatprep.subr.mxu0 0.0
    %89 = vmatpush1.msra.mxu0 0.0
    %90 = vmatprep.subr.mxu0 0.0
    %91 = vmatpush1.msra.mxu0 0.0
    %92 = vmatprep.subr.mxu0 0.0
    %93 = vmatpush1.msra.mxu0 0.0
    %94 = vmatprep.subr.mxu0 0.0
    %95 = vmatpush1.msra.mxu0 0.0
    %96 = vmatprep.subr.mxu0 0.0
    %97 = vmatpush1.msra.mxu0 0.0
    %98 = vmatprep.subr.mxu0 0.0
    %99 = vmatpush1.msra.mxu0 0.0
    %100 = vmatprep.subr.mxu0 0.0
    %101 = vmatpush1.msra.mxu0 0.0
    %102 = vmatprep.subr.mxu0 0.0
    %103 = vmatpush1.msra.mxu0 0.0
    %104 = vmatprep.mubr.f32.mxu0 0.0
    %105 = vmatmul.mubr.f32.gmra.mrb[0].mxu0 %v35
    %v106 = vpop.f32.mrb[0].mxu0
    %v107 = vadd.f32 %v31, %v106
    %v108 = vpop.f32.mrb[0].mxu0
    %109 = vmatprep.mubr.f32.mxu0 0.0
    %110 = vmatmul.mubr.f32.gmra.mrb[0].mxu0 %v38
    %v111 = vpop.f32.mrb[0].mxu0
    %v112 = vadd.f32 %v31, %v111
    %v113 = vpop.f32.mrb[0].mxu0
    %114 = vdwg.mxu0
    %v115 = vmax.f32 %v107, 0.0
    %v116 = vmax.f32 %v112, 0.0
    %v117 = vld [vmem:[%s3] sm:$0xff]
    %v118 = vld [vmem:[%s3 + $0x8] sm:$0xff]
    %v119 = vld [vmem:[%s3 + $0x10] sm:$0xff]
    %v120 = vld [vmem:[%s3 + $0x18] sm:$0xff]
    %v121 = vld [vmem:[%s3 + $0x20] sm:$0xff]
    %v122 = vld [vmem:[%s3 + $0x28] sm:$0xff]
    %v123 = vld [vmem:[%s3 + $0x30] sm:$0xff]
    %v124 = vld [vmem:[%s3 + $0x38] sm:$0xff]
    %v125 = vld [vmem:[%s3 + $0x40] sm:$0xff]
    %v126 = vld [vmem:[%s3 + $0x48] sm:$0xff]
    %v127 = vld [vmem:[%s3 + $0x50] sm:$0xff]
    %v128 = vld [vmem:[%s3 + $0x58] sm:$0xff]
    %v129 = vld [vmem:[%s3 + $0x60] sm:$0xff]
    %v130 = vld [vmem:[%s3 + $0x68] sm:$0xff]
    %v131 = vld [vmem:[%s3 + $0x70] sm:$0xff]
    %v132 = vld [vmem:[%s3 + $0x78] sm:$0xff]
    %v133 = vld [vmem:[%s4] sm:$0x1]
    %v135 = vlaneseq
    %v136 = vshrl.u32 %v135, 7
    %v137 = vsub.s32 0, %v136
    %v138 = vrot.slane %v133, %v137
    %140 = vmatprep.subr.mxu0 0.0
    %141 = vmatpush1.msra.mxu0 %v117
    %142 = vmatprep.subr.mxu0 0.0
    %143 = vmatpush1.msra.mxu0 %v118
    %144 = vmatprep.subr.mxu0 0.0
    %145 = vmatpush1.msra.mxu0 %v119
    %146 = vmatprep.subr.mxu0 0.0
    %147 = vmatpush1.msra.mxu0 %v120
    %148 = vmatprep.subr.mxu0 0.0
    %149 = vmatpush1.msra.mxu0 %v121
    %150 = vmatprep.subr.mxu0 0.0
    %151 = vmatpush1.msra.mxu0 %v122
    %152 = vmatprep.subr.mxu0 0.0
    %153 = vmatpush1.msra.mxu0 %v123
    %154 = vmatprep.subr.mxu0 0.0
    %155 = vmatpush1.msra.mxu0 %v124
    %156 = vmatprep.subr.mxu0 0.0
    %157 = vmatpush1.msra.mxu0 %v125
    %158 = vmatprep.subr.mxu0 0.0
    %159 = vmatpush1.msra.mxu0 %v126
    %160 = vmatprep.subr.mxu0 0.0
    %161 = vmatpush1.msra.mxu0 %v127
    %162 = vmatprep.subr.mxu0 0.0
    %163 = vmatpush1.msra.mxu0 %v128
    %164 = vmatprep.subr.mxu0 0.0
    %165 = vmatpush1.msra.mxu0 %v129
    %166 = vmatprep.subr.mxu0 0.0
    %167 = vmatpush1.msra.mxu0 %v130
    %168 = vmatprep.subr.mxu0 0.0
    %169 = vmatpush1.msra.mxu0 %v131
    %170 = vmatprep.subr.mxu0 0.0
    %171 = vmatpush1.msra.mxu0 %v132
    %172 = vmatprep.subr.mxu0 0.0
    %173 = vmatpush1.msra.mxu0 0.0
    %174 = vmatprep.subr.mxu0 0.0
    %175 = vmatpush1.msra.mxu0 0.0
    %176 = vmatprep.subr.mxu0 0.0
    %177 = vmatpush1.msra.mxu0 0.0
    %178 = vmatprep.subr.mxu0 0.0
    %179 = vmatpush1.msra.mxu0 0.0
    %180 = vmatprep.subr.mxu0 0.0
    %181 = vmatpush1.msra.mxu0 0.0
    %182 = vmatprep.subr.mxu0 0.0
    %183 = vmatpush1.msra.mxu0 0.0
    %184 = vmatprep.subr.mxu0 0.0
    %185 = vmatpush1.msra.mxu0 0.0
    %186 = vmatprep.subr.mxu0 0.0
    %187 = vmatpush1.msra.mxu0 0.0
    %188 = vmatprep.subr.mxu0 0.0
    %189 = vmatpush1.msra.mxu0 0.0
    %190 = vmatprep.subr.mxu0 0.0
    %191 = vmatpush1.msra.mxu0 0.0
    %192 = vmatprep.subr.mxu0 0.0
    %193 = vmatpush1.msra.mxu0 0.0
    %194 = vmatprep.subr.mxu0 0.0
    %195 = vmatpush1.msra.mxu0 0.0
    %196 = vmatprep.subr.mxu0 0.0
    %197 = vmatpush1.msra.mxu0 0.0
    %198 = vmatprep.subr.mxu0 0.0
    %199 = vmatpush1.msra.mxu0 0.0
    %200 = vmatprep.subr.mxu0 0.0
    %201 = vmatpush1.msra.mxu0 0.0
    %202 = vmatprep.subr.mxu0 0.0
    %203 = vmatpush1.msra.mxu0 0.0
    %204 = vmatprep.mubr.f32.mxu0 0.0
    %205 = vmatmul.mubr.f32.gmra.mrb[0].mxu0 %v115
    %v206 = vpop.f32.mrb[0].mxu0
    %v207 = vadd.f32 %v138, %v206
    %v208 = vpop.f32.mrb[0].mxu0
    %209 = vmatprep.mubr.f32.mxu0 0.0
    %210 = vmatmul.mubr.f32.gmra.mrb[0].mxu0 %v116
    %v211 = vpop.f32.mrb[0].mxu0
    %v212 = vadd.f32 %v138, %v211
    %v213 = vpop.f32.mrb[0].mxu0
    %214 = vdwg.mxu0
    %vm215 = vcmask 31744
    %216 = vst.msk [vmem:[#allocation2] sm:$0xff] %vm215, %v207
    %217 = vst.msk [vmem:[#allocation2 + $0x8] sm:$0xff] %vm215, %v212
    // Predicated region
    $region22: #{qnetwork_forward.1} parent=1 // pred_check
      _
    $region23: #{qnetwork_forward.1} parent=1 // pred_check_branch
      %219 = sbr.rel (0) target = $region25
    $region24: #{qnetwork_forward.1} parent=1 // pred_region
      // Predicated region
      $region26: #{qnetwork_forward.1} parent=24 // pred_check
        _
      $region27: #{qnetwork_forward.1} parent=24 // pred_check_branch
        %221 = sbr.rel (0) target = $region29
      $region28: #{qnetwork_forward.1} parent=24 // pred_region
        // Predicated region
        $region30: #{qnetwork_forward.1} parent=28 // pred_check
          _
        $region31: #{qnetwork_forward.1} parent=28 // pred_check_branch
          %223 = sbr.rel (0) target = $region33
        $region32: #{qnetwork_forward.1} parent=28 // pred_region
          // Predicated region
          $region45: #{qnetwork_forward.1} parent=32 // pred_check
            _
          $region46: #{qnetwork_forward.1} parent=32 // pred_check_branch
            %238 = sbr.rel (0) target = $region48
          $region47: #{qnetwork_forward.1} parent=32 // pred_region
            loop: start=0, step=1, limit=1
            $region49: #{qnetwork_forward.1} parent=47 // loop_pre_header
              _
            $region50: #{qnetwork_forward.1} parent=47 // loop_header
              %s240 = sphi 0, %s244
              %p241 = scmp.ge.s32.totalorder %s240, 1
              %s245 = sphi [#allocation2], [#allocation2]
              %s246 = sphi %s5, %s5
            $region51: #{qnetwork_forward.1} parent=47 // loop_header_branch
              %243 = sbr.rel (%p241) target = $region55
            $region52: #{qnetwork_forward.1} parent=47 // loop_body
              %v247 = vld [vmem:[%s245] sm:$0xff]
              %248 = vst [vmem:[%s246] sm:$0xff] %v247
            $region53: #{qnetwork_forward.1} parent=47 // loop_footer
              %s244 = sadd.s32 1, %s240
            $region54: #{qnetwork_forward.1} parent=47 // loop_footer_branch
              %239 = sbr.rel target = $region50
            $region55: #{qnetwork_forward.1} parent=47 // loop_exit
              _
          $region48: #{qnetwork_forward.1} parent=32 // pred_fallthru
            _
          // Predicated region
          $region56: #{qnetwork_forward.1} parent=32 // pred_check
            _
          $region57: #{qnetwork_forward.1} parent=32 // pred_check_branch
            %250 = sbr.rel target = $region59
          $region58: #{qnetwork_forward.1} parent=32 // pred_region
            _
          $region59: #{qnetwork_forward.1} parent=32 // pred_fallthru
            _
        $region33: #{qnetwork_forward.1} parent=28 // pred_fallthru
          _
        // Predicated region
        $region34: #{qnetwork_forward.1} parent=28 // pred_check
          _
        $region35: #{qnetwork_forward.1} parent=28 // pred_check_branch
          %225 = sbr.rel target = $region37
        $region36: #{qnetwork_forward.1} parent=28 // pred_region
          loop: start=0, step=1, limit=1
          $region38: #{qnetwork_forward.1} parent=36 // loop_pre_header
            _
          $region39: #{qnetwork_forward.1} parent=36 // loop_header
            %s228 = sphi 0, %s232
            %p229 = scmp.ge.s32.totalorder %s228, 1
            %s233 = sphi [#allocation2], [#allocation2]
            %s234 = sphi %s5, %s5
          $region40: #{qnetwork_forward.1} parent=36 // loop_header_branch
            %231 = sbr.rel (%p229) target = $region44
          $region41: #{qnetwork_forward.1} parent=36 // loop_body
            %v235 = vld [vmem:[%s233] sm:$0xff]
            %236 = vst [vmem:[%s234] sm:$0xff] %v235
          $region42: #{qnetwork_forward.1} parent=36 // loop_footer
            %s232 = sadd.s32 1, %s228
          $region43: #{qnetwork_forward.1} parent=36 // loop_footer_branch
            %227 = sbr.rel target = $region39
          $region44: #{qnetwork_forward.1} parent=36 // loop_exit
            _
        $region37: #{qnetwork_forward.1} parent=28 // pred_fallthru
          _
      $region29: #{qnetwork_forward.1} parent=24 // pred_fallthru
        _
      %251 = vnop
    $region25: #{qnetwork_forward.1} parent=1 // pred_fallthru
      _
    // Predicated region
    $region60: #{qnetwork_forward.1} parent=1 // pred_check
      _
    $region61: #{qnetwork_forward.1} parent=1 // pred_check_branch
      %253 = sbr.rel (0) target = $region63
    $region62: #{qnetwork_forward.1} parent=1 // pred_region
      _
    $region63: #{qnetwork_forward.1} parent=1 // pred_fallthru
      _

</llo_original>
